<compile_context>
chip_gen: v7x
topology: tpu7x:2x2x1
jax: 0.10.0
libtpu: 0.0.40
codegen_flags: <defaults>
</compile_context>

<pallas_src>
import functools

import jax
import jax.numpy as jnp
import numpy as np
from jax.experimental import pallas as pl
from jax.experimental.pallas import tpu as pltpu


# Row indices inside the packed [_N_ROWS, hmax] parameter slab (built once).
_ROW_W1RX, _ROW_W1RY, _ROW_B1R, _ROW_W2R = 0, 1, 2, 3
_ROW_W1AX, _ROW_W1AY, _ROW_B1A, _ROW_W2A = 4, 5, 6, 7
_ROW_W3REP, _ROW_W3RV, _ROW_W3ANP, _ROW_W3ACP, _ROW_B3, _ROW_W4 = 8, 9, 10, 11, 12, 13
_ROW_SCAL = 14          # lane 0: b2_rel, lane 1: b2_abs, lane 2: b4_att
_N_ROWS = 15


# ---------------------------------------------------------------------------
# Pallas kernel: whole forward pass, vectorized over all (center, neighbour)
# pairs with the MLP hidden axis lane-packed.
#   pair layout: [N_center (leading), N_neighbour (sublane), hidden (lane)]
# ---------------------------------------------------------------------------
def _stp_kernel(pos_ref, hid_ref, prm_ref, out_ref, *, rel_h, abs_h, att_h):
    """pos_ref: [N+1, N, 4] VMEM  block 0   = neighbour view (ex,ey,vx,vy per agent j)
                                  blocks 1: = centre view, pre-broadcast over j
       hid_ref: [N, H]      VMEM  per-agent hidden state
       prm_ref: [_N_ROWS, hmax] VMEM  lane-packed MLP weights/biases
       out_ref: [N, 1, H]   VMEM  pooled GPH (squeezed to [N, H] in the wrapper)
    """
    pos = pos_ref[...]                                   # [N+1, N, 4]
    hid = hid_ref[...]                                   # [N, H]
    prm = prm_ref[...]                                   # [_N_ROWS, hmax]

    nb = pos[0:1]                                        # [1, N, 4] neighbour view
    ct = pos[1:]                                         # [N, N, 4] centre view

    ex_n, ey_n = nb[:, :, 0:1], nb[:, :, 1:2]            # [1, N, 1]
    vx_n, vy_n = nb[:, :, 2:3], nb[:, :, 3:4]
    ex_c, ey_c = ct[:, :, 0:1], ct[:, :, 1:2]            # [N, N, 1]
    vx_c, vy_c = ct[:, :, 2:3], ct[:, :, 3:4]

    def wrow(r, h):                                      # lane-packed weight slab
        return prm[r:r + 1, 0:h].reshape(1, 1, h)        # [1, 1, h]

    def scal(c):                                         # second-layer scalar bias
        return prm[_ROW_SCAL:_ROW_SCAL + 1, c:c + 1].reshape(1, 1, 1)

    def mlp2(x, y, wx, wy, b1, w2, b2):
        # make_mlp([2, h, 1], batch_norm=False): Linear->ReLU->Linear->ReLU.
        # One VALU op per layer covers all h channels (hidden axis on lanes);
        # the 2nd layer is a lane reduce on the XLU.
        h1 = jnp.maximum(x * wx + y * wy + b1, 0.0)                       # [..., h]
        return jnp.maximum(
            jnp.sum(h1 * w2, axis=-1, keepdims=True) + b2, 0.0)           # [..., 1]

    w1rx, w1ry = wrow(_ROW_W1RX, rel_h), wrow(_ROW_W1RY, rel_h)
    b1r, w2r, b2r = wrow(_ROW_B1R, rel_h), wrow(_ROW_W2R, rel_h), scal(0)
    w1ax, w1ay = wrow(_ROW_W1AX, abs_h), wrow(_ROW_W1AY, abs_h)
    b1a, w2a, b2a = wrow(_ROW_B1A, abs_h), wrow(_ROW_W2A, abs_h), scal(1)
    b4 = scal(2)

    # Pairwise geometry: REP = end[j]-end[i], RV = REP - RBEP = v[j]-v[i].
    rel_rep = mlp2(ex_n - ex_c, ey_n - ey_c, w1rx, w1ry, b1r, w2r, b2r)   # [N, N, 1]
    rel_rv = mlp2(vx_n - vx_c, vy_n - vy_c, w1rx, w1ry, b1r, w2r, b2r)    # [N, N, 1]
    # abs_mlp: ANP depends only on the neighbour, ACP only on the centre.
    anp = mlp2(ex_n, ey_n, w1ax, w1ay, b1a, w2a, b2a)                     # [1, N, 1]
    acp = mlp2(ex_c, ey_c, w1ax, w1ay, b1a, w2a, b2a)                     # [N, N, 1]

    # attention_mlp over features [rel(REP), rel(RV), abs(ANP), abs(ACP)].
    h_att = jnp.maximum(
        rel_rep * wrow(_ROW_W3REP, att_h)
        + rel_rv * wrow(_ROW_W3RV, att_h)
        + anp * wrow(_ROW_W3ANP, att_h)
        + acp * wrow(_ROW_W3ACP, att_h)
        + wrow(_ROW_B3, att_h), 0.0)                                      # [N, N, TH]
    score = jnp.maximum(
        jnp.sum(h_att * wrow(_ROW_W4, att_h), axis=-1, keepdims=True) + b4,
        0.0)                                                              # [N, N, 1]

    # Softmax over the neighbour axis (axis=1) for every centre at once.
    m = jnp.max(score, axis=1, keepdims=True)                             # [N, 1, 1]
    e = jnp.exp(score - m)
    s = jnp.sum(e, axis=1, keepdims=True)                                 # [N, 1, 1]
    # exact reciprocal (approx=True risks the 1e-4/1e-5 tolerance)
    gw = e * pl.reciprocal(s, approx=False)                               # [N, N, 1]

    # GPH[i, :] = sum_j GW[i, j] * hidden[j, :]
    # -> one broadcast multiply + one sublane reduce (no slice loop / FMA chain).
    out_ref[...] = jnp.sum(gw * hid[None, :, :], axis=1, keepdims=True)   # [N, 1, H]


# ---------------------------------------------------------------------------
# One-time parameter packing (call at model init, NOT per forward call).
# First-layer weights are stored transposed so that y = x @ W.
# ---------------------------------------------------------------------------
def pack_stp_params(params):
    """params: 12-tuple (w1r,b1r,w2r,b2r, w1a,b1a,w2a,b2a, w3,b3,w4,b4).
       Returns (prm [_N_ROWS, hmax] f32, (rel_h, abs_h, att_h))."""
    (w1r, b1r, w2r, b2r, w1a, b1a, w2a, b2a, w3, b3, w4, b4) = (
        jnp.asarray(p, jnp.float32) for p in params)
    rel_h, abs_h, att_h = int(w1r.shape[1]), int(w1a.shape[1]), int(w3.shape[1])
    hmax = max(rel_h, abs_h, att_h, 8)

    def row(v):
        v = v.reshape(-1)
        return jnp.pad(v, (0, hmax - v.shape[0]))

    prm = jnp.stack([
        row(w1r[0]), row(w1r[1]), row(b1r), row(w2r),
        row(w1a[0]), row(w1a[1]), row(b1a), row(w2a),
        row(w3[0]), row(w3[1]), row(w3[2]), row(w3[3]), row(b3), row(w4),
        row(jnp.stack([b2r.reshape(()), b2a.reshape(()), b4.reshape(())])),
    ], axis=0)
    return prm, (rel_h, abs_h, att_h)


# ---------------------------------------------------------------------------
# Forward wrapper — a single jit so the position glue fuses with the call.
# ---------------------------------------------------------------------------
@functools.partial(jax.jit, static_argnames=("mlp_dims",))
def stp_attention_pooling_forward(hidden_state, group_track, prm, *, mlp_dims):
    """hidden_state: [N, H] f32 (torch's [1, N, H] squeezed)
       group_track : [N, L, 2] f32
       prm, mlp_dims: output of pack_stp_params (built once at init)."""
    rel_h, abs_h, att_h = mlp_dims
    N, H = hidden_state.shape
    if N == 1:                              # torch: `if len(hidden_state) == 1`
        return hidden_state
    # O(N^2 * h) intermediates: fine for group sizes, guard against misuse.
    if N > 256:
        raise ValueError("stp_attention_pooling kernel is untiled; N must be small")

    hid = hidden_state.astype(jnp.float32)
    end = group_track[:, -1, :].astype(jnp.float32)              # [N, 2]
    bf = group_track[:, -2, :].astype(jnp.float32)               # [N, 2]
    agent = jnp.concatenate([end, end - bf], axis=1)             # [N, 4] (ex,ey,vx,vy)
    # Single merged position operand: block 0 = neighbour view, blocks 1.. =
    # centre view pre-broadcast over the neighbour axis (no in-kernel relayout).
    pos3 = jnp.concatenate(
        [agent[None, :, :],
         jnp.broadcast_to(agent[:, None, :], (N, N, 4))], axis=0)  # [N+1, N, 4]

    kernel = functools.partial(_stp_kernel, rel_h=rel_h, abs_h=abs_h, att_h=att_h)
    vmem = pl.BlockSpec(memory_space=pltpu.MemorySpace.VMEM)

    out = pl.pallas_call(
        kernel,
        out_shape=jax.ShapeDtypeStruct((N, 1, H), jnp.float32),
        in_specs=[vmem, vmem, vmem],
        out_specs=vmem,
    )(pos3, hid, prm)
    return out.reshape(N, H)


# ---------------------------------------------------------------------------
# Pure-JAX reference (mirrors the PyTorch code) for verification
# ---------------------------------------------------------------------------
def _reference_forward(hidden_state, group_track, params):
    (w1r, b1r, w2r, b2r, w1a, b1a, w2a, b2a, w3, b3, w4, b4) = params
    end = group_track[:, -1, :]
    bf = group_track[:, -2, :]
    N = end.shape[0]

    def mlp(x, w1, b1, w2, b2):
        h = jax.nn.relu(x @ w1 + b1)
        return jax.nn.relu(h @ w2.T + b2)

    rows = []
    for i in range(N):
        rep = end - end[i:i + 1]
        rv = rep - (bf - bf[i:i + 1])
        anp = end
        acp = jnp.broadcast_to(end[i:i + 1], (N, 2))
        feat = jnp.concatenate(
            [mlp(rep, w1r, b1r, w2r, b2r),
             mlp(rv, w1r, b1r, w2r, b2r),
             mlp(anp, w1a, b1a, w2a, b2a),
             mlp(acp, w1a, b1a, w2a, b2a)], axis=1)          # [N, 4]
        h1 = jax.nn.relu(feat @ w3 + b3)
        score = jax.nn.relu(h1 @ w4.T + b4)[:, 0]            # [N]
        gw = jax.nn.softmax(score)
        rows.append(gw @ hidden_state)
    return jnp.stack(rows, axis=0)


# ---------------------------------------------------------------------------
if __name__ == "__main__":
    N, L, H = 6, 8, 32          # agents, track length, hidden_size
    RH, AH, TH = 16, 16, 16     # rel / abs / attention MLP hidden sizes
    f32 = jnp.float32

    key = jax.random.PRNGKey(0)
    ks = jax.random.split(key, 14)

    group_track = jax.random.normal(ks[0], (N, L, 2), f32)
    hidden_state = jax.random.normal(ks[1], (N, H), f32)

    # Deterministic synthetic parameters (first-layer weights stored as x @ W)
    params = (
        0.5 * jax.random.normal(ks[2], (2, RH), f32),    # rel_mlp  Linear(2,RH) W^T
        0.1 * jax.random.normal(ks[3], (1, RH), f32),    #          bias
        0.5 * jax.random.normal(ks[4], (1, RH), f32),    # rel_mlp  Linear(RH,1) W
        0.1 * jax.random.normal(ks[5], (1, 1), f32),     #          bias
        0.5 * jax.random.normal(ks[6], (2, AH), f32),    # abs_mlp  Linear(2,AH) W^T
        0.1 * jax.random.normal(ks[7], (1, AH), f32),
        0.5 * jax.random.normal(ks[8], (1, AH), f32),    # abs_mlp  Linear(AH,1) W
        0.1 * jax.random.normal(ks[9], (1, 1), f32),
        0.5 * jax.random.normal(ks[10], (4, TH), f32),   # attn_mlp Linear(4,TH) W^T
        0.1 * jax.random.normal(ks[11], (1, TH), f32),
        0.5 * jax.random.normal(ks[12], (1, TH), f32),   # attn_mlp Linear(TH,1) W
        0.1 * jax.random.normal(ks[13], (1, 1), f32),
    )

    # One-time (init-time) packing of the 12 tiny parameter arrays.
    prm, mlp_dims = pack_stp_params(params)

    out = jax.block_until_ready(
        stp_attention_pooling_forward(hidden_state, group_track, prm,
                                      mlp_dims=mlp_dims))
    ref = _reference_forward(hidden_state, group_track, params)
    np.testing.assert_allclose(np.asarray(out), np.asarray(ref),
                               rtol=1e-4, atol=1e-5)
    print("KERNEL_OK")
</pallas_src>

<mosaic_0001>
module attributes {stable_mosaic.version = 11 : i64} {
  func.func @_stp_kernel(%arg0: memref<7x6x4xf32, #tpu.memory_space<vmem>>, %arg1: memref<6x32xf32, #tpu.memory_space<vmem>>, %arg2: memref<15x16xf32, #tpu.memory_space<vmem>>, %arg3: memref<6x1x32xf32, #tpu.memory_space<vmem>>) attributes {dimension_semantics = [], scalar_prefetch = 0 : i64, scratch_operands = 0 : i64, tpu.core_type = #tpu.core_type<tc>} {
    %c0 = arith.constant 0 : index
    %c0_0 = arith.constant 0 : index
    %c0_1 = arith.constant 0 : index
    %0 = vector.load %arg0[%c0, %c0_0, %c0_1] : memref<7x6x4xf32, #tpu.memory_space<vmem>>, vector<7x6x4xf32>
    %c0_2 = arith.constant 0 : index
    %c0_3 = arith.constant 0 : index
    %1 = vector.load %arg1[%c0_2, %c0_3] : memref<6x32xf32, #tpu.memory_space<vmem>>, vector<6x32xf32>
    %c0_4 = arith.constant 0 : index
    %c0_5 = arith.constant 0 : index
    %2 = vector.load %arg2[%c0_4, %c0_5] : memref<15x16xf32, #tpu.memory_space<vmem>>, vector<15x16xf32>
    %3 = vector.extract_strided_slice %0 {offsets = [0, 0, 0], sizes = [1, 6, 4], strides = [1, 1, 1]} : vector<7x6x4xf32> to vector<1x6x4xf32>
    %4 = vector.extract_strided_slice %0 {offsets = [1, 0, 0], sizes = [6, 6, 4], strides = [1, 1, 1]} : vector<7x6x4xf32> to vector<6x6x4xf32>
    %5 = vector.extract_strided_slice %3 {offsets = [0, 0, 0], sizes = [1, 6, 1], strides = [1, 1, 1]} : vector<1x6x4xf32> to vector<1x6x1xf32>
    %6 = vector.extract_strided_slice %3 {offsets = [0, 0, 1], sizes = [1, 6, 1], strides = [1, 1, 1]} : vector<1x6x4xf32> to vector<1x6x1xf32>
    %7 = vector.extract_strided_slice %3 {offsets = [0, 0, 2], sizes = [1, 6, 1], strides = [1, 1, 1]} : vector<1x6x4xf32> to vector<1x6x1xf32>
    %8 = vector.extract_strided_slice %3 {offsets = [0, 0, 3], sizes = [1, 6, 1], strides = [1, 1, 1]} : vector<1x6x4xf32> to vector<1x6x1xf32>
    %9 = vector.extract_strided_slice %4 {offsets = [0, 0, 0], sizes = [6, 6, 1], strides = [1, 1, 1]} : vector<6x6x4xf32> to vector<6x6x1xf32>
    %10 = vector.extract_strided_slice %4 {offsets = [0, 0, 1], sizes = [6, 6, 1], strides = [1, 1, 1]} : vector<6x6x4xf32> to vector<6x6x1xf32>
    %11 = vector.extract_strided_slice %4 {offsets = [0, 0, 2], sizes = [6, 6, 1], strides = [1, 1, 1]} : vector<6x6x4xf32> to vector<6x6x1xf32>
    %12 = vector.extract_strided_slice %4 {offsets = [0, 0, 3], sizes = [6, 6, 1], strides = [1, 1, 1]} : vector<6x6x4xf32> to vector<6x6x1xf32>
    %13 = vector.extract_strided_slice %2 {offsets = [0, 0], sizes = [1, 16], strides = [1, 1]} : vector<15x16xf32> to vector<1x16xf32>
    %14 = vector.shape_cast %13 : vector<1x16xf32> to vector<1x1x16xf32>
    %15 = vector.extract_strided_slice %2 {offsets = [1, 0], sizes = [1, 16], strides = [1, 1]} : vector<15x16xf32> to vector<1x16xf32>
    %16 = vector.shape_cast %15 : vector<1x16xf32> to vector<1x1x16xf32>
    %17 = vector.extract_strided_slice %2 {offsets = [2, 0], sizes = [1, 16], strides = [1, 1]} : vector<15x16xf32> to vector<1x16xf32>
    %18 = vector.shape_cast %17 : vector<1x16xf32> to vector<1x1x16xf32>
    %19 = vector.extract_strided_slice %2 {offsets = [3, 0], sizes = [1, 16], strides = [1, 1]} : vector<15x16xf32> to vector<1x16xf32>
    %20 = vector.shape_cast %19 : vector<1x16xf32> to vector<1x1x16xf32>
    %21 = vector.extract_strided_slice %2 {offsets = [14, 0], sizes = [1, 1], strides = [1, 1]} : vector<15x16xf32> to vector<1x1xf32>
    %22 = vector.shape_cast %21 : vector<1x1xf32> to vector<1x1x1xf32>
    %23 = vector.extract_strided_slice %2 {offsets = [4, 0], sizes = [1, 16], strides = [1, 1]} : vector<15x16xf32> to vector<1x16xf32>
    %24 = vector.shape_cast %23 : vector<1x16xf32> to vector<1x1x16xf32>
    %25 = vector.extract_strided_slice %2 {offsets = [5, 0], sizes = [1, 16], strides = [1, 1]} : vector<15x16xf32> to vector<1x16xf32>
    %26 = vector.shape_cast %25 : vector<1x16xf32> to vector<1x1x16xf32>
    %27 = vector.extract_strided_slice %2 {offsets = [6, 0], sizes = [1, 16], strides = [1, 1]} : vector<15x16xf32> to vector<1x16xf32>
    %28 = vector.shape_cast %27 : vector<1x16xf32> to vector<1x1x16xf32>
    %29 = vector.extract_strided_slice %2 {offsets = [7, 0], sizes = [1, 16], strides = [1, 1]} : vector<15x16xf32> to vector<1x16xf32>
    %30 = vector.shape_cast %29 : vector<1x16xf32> to vector<1x1x16xf32>
    %31 = vector.extract_strided_slice %2 {offsets = [14, 1], sizes = [1, 1], strides = [1, 1]} : vector<15x16xf32> to vector<1x1xf32>
    %32 = vector.shape_cast %31 : vector<1x1xf32> to vector<1x1x1xf32>
    %33 = vector.extract_strided_slice %2 {offsets = [14, 2], sizes = [1, 1], strides = [1, 1]} : vector<15x16xf32> to vector<1x1xf32>
    %34 = vector.shape_cast %33 : vector<1x1xf32> to vector<1x1x1xf32>
    %35 = vector.broadcast %5 : vector<1x6x1xf32> to vector<6x6x1xf32>
    %36 = arith.subf %35, %9 : vector<6x6x1xf32>
    %37 = vector.broadcast %6 : vector<1x6x1xf32> to vector<6x6x1xf32>
    %38 = arith.subf %37, %10 : vector<6x6x1xf32>
    %39 = vector.broadcast %36 : vector<6x6x1xf32> to vector<6x6x16xf32>
    %40 = vector.broadcast %14 : vector<1x1x16xf32> to vector<6x6x16xf32>
    %41 = arith.mulf %39, %40 : vector<6x6x16xf32>
    %42 = vector.broadcast %38 : vector<6x6x1xf32> to vector<6x6x16xf32>
    %43 = vector.broadcast %16 : vector<1x1x16xf32> to vector<6x6x16xf32>
    %44 = arith.mulf %42, %43 : vector<6x6x16xf32>
    %45 = arith.addf %41, %44 : vector<6x6x16xf32>
    %46 = vector.broadcast %18 : vector<1x1x16xf32> to vector<6x6x16xf32>
    %47 = arith.addf %45, %46 : vector<6x6x16xf32>
    %cst = arith.constant 0.000000e+00 : f32
    %48 = vector.broadcast %cst : f32 to vector<6x6x16xf32>
    %49 = arith.maximumf %47, %48 : vector<6x6x16xf32>
    %50 = vector.broadcast %20 : vector<1x1x16xf32> to vector<6x6x16xf32>
    %51 = arith.mulf %49, %50 : vector<6x6x16xf32>
    %cst_6 = arith.constant dense<0.000000e+00> : vector<6x6xf32>
    %52 = vector.multi_reduction <add>, %51, %cst_6 [2] : vector<6x6x16xf32> to vector<6x6xf32>
    %53 = vector.shape_cast %52 : vector<6x6xf32> to vector<6x6x1xf32>
    %54 = vector.broadcast %22 : vector<1x1x1xf32> to vector<6x6x1xf32>
    %55 = arith.addf %53, %54 : vector<6x6x1xf32>
    %cst_7 = arith.constant 0.000000e+00 : f32
    %56 = vector.broadcast %cst_7 : f32 to vector<6x6x1xf32>
    %57 = arith.maximumf %55, %56 : vector<6x6x1xf32>
    %58 = vector.broadcast %7 : vector<1x6x1xf32> to vector<6x6x1xf32>
    %59 = arith.subf %58, %11 : vector<6x6x1xf32>
    %60 = vector.broadcast %8 : vector<1x6x1xf32> to vector<6x6x1xf32>
    %61 = arith.subf %60, %12 : vector<6x6x1xf32>
    %62 = vector.broadcast %59 : vector<6x6x1xf32> to vector<6x6x16xf32>
    %63 = vector.broadcast %14 : vector<1x1x16xf32> to vector<6x6x16xf32>
    %64 = arith.mulf %62, %63 : vector<6x6x16xf32>
    %65 = vector.broadcast %61 : vector<6x6x1xf32> to vector<6x6x16xf32>
    %66 = vector.broadcast %16 : vector<1x1x16xf32> to vector<6x6x16xf32>
    %67 = arith.mulf %65, %66 : vector<6x6x16xf32>
    %68 = arith.addf %64, %67 : vector<6x6x16xf32>
    %69 = vector.broadcast %18 : vector<1x1x16xf32> to vector<6x6x16xf32>
    %70 = arith.addf %68, %69 : vector<6x6x16xf32>
    %cst_8 = arith.constant 0.000000e+00 : f32
    %71 = vector.broadcast %cst_8 : f32 to vector<6x6x16xf32>
    %72 = arith.maximumf %70, %71 : vector<6x6x16xf32>
    %73 = vector.broadcast %20 : vector<1x1x16xf32> to vector<6x6x16xf32>
    %74 = arith.mulf %72, %73 : vector<6x6x16xf32>
    %cst_9 = arith.constant dense<0.000000e+00> : vector<6x6xf32>
    %75 = vector.multi_reduction <add>, %74, %cst_9 [2] : vector<6x6x16xf32> to vector<6x6xf32>
    %76 = vector.shape_cast %75 : vector<6x6xf32> to vector<6x6x1xf32>
    %77 = vector.broadcast %22 : vector<1x1x1xf32> to vector<6x6x1xf32>
    %78 = arith.addf %76, %77 : vector<6x6x1xf32>
    %cst_10 = arith.constant 0.000000e+00 : f32
    %79 = vector.broadcast %cst_10 : f32 to vector<6x6x1xf32>
    %80 = arith.maximumf %78, %79 : vector<6x6x1xf32>
    %81 = vector.broadcast %5 : vector<1x6x1xf32> to vector<1x6x16xf32>
    %82 = vector.broadcast %24 : vector<1x1x16xf32> to vector<1x6x16xf32>
    %83 = arith.mulf %81, %82 : vector<1x6x16xf32>
    %84 = vector.broadcast %6 : vector<1x6x1xf32> to vector<1x6x16xf32>
    %85 = vector.broadcast %26 : vector<1x1x16xf32> to vector<1x6x16xf32>
    %86 = arith.mulf %84, %85 : vector<1x6x16xf32>
    %87 = arith.addf %83, %86 : vector<1x6x16xf32>
    %88 = vector.broadcast %28 : vector<1x1x16xf32> to vector<1x6x16xf32>
    %89 = arith.addf %87, %88 : vector<1x6x16xf32>
    %cst_11 = arith.constant 0.000000e+00 : f32
    %90 = vector.broadcast %cst_11 : f32 to vector<1x6x16xf32>
    %91 = arith.maximumf %89, %90 : vector<1x6x16xf32>
    %92 = vector.broadcast %30 : vector<1x1x16xf32> to vector<1x6x16xf32>
    %93 = arith.mulf %91, %92 : vector<1x6x16xf32>
    %cst_12 = arith.constant dense<0.000000e+00> : vector<1x6xf32>
    %94 = vector.multi_reduction <add>, %93, %cst_12 [2] : vector<1x6x16xf32> to vector<1x6xf32>
    %95 = vector.shape_cast %94 : vector<1x6xf32> to vector<1x6x1xf32>
    %96 = vector.broadcast %32 : vector<1x1x1xf32> to vector<1x6x1xf32>
    %97 = arith.addf %95, %96 : vector<1x6x1xf32>
    %cst_13 = arith.constant 0.000000e+00 : f32
    %98 = vector.broadcast %cst_13 : f32 to vector<1x6x1xf32>
    %99 = arith.maximumf %97, %98 : vector<1x6x1xf32>
    %100 = vector.broadcast %9 : vector<6x6x1xf32> to vector<6x6x16xf32>
    %101 = vector.broadcast %24 : vector<1x1x16xf32> to vector<6x6x16xf32>
    %102 = arith.mulf %100, %101 : vector<6x6x16xf32>
    %103 = vector.broadcast %10 : vector<6x6x1xf32> to vector<6x6x16xf32>
    %104 = vector.broadcast %26 : vector<1x1x16xf32> to vector<6x6x16xf32>
    %105 = arith.mulf %103, %104 : vector<6x6x16xf32>
    %106 = arith.addf %102, %105 : vector<6x6x16xf32>
    %107 = vector.broadcast %28 : vector<1x1x16xf32> to vector<6x6x16xf32>
    %108 = arith.addf %106, %107 : vector<6x6x16xf32>
    %cst_14 = arith.constant 0.000000e+00 : f32
    %109 = vector.broadcast %cst_14 : f32 to vector<6x6x16xf32>
    %110 = arith.maximumf %108, %109 : vector<6x6x16xf32>
    %111 = vector.broadcast %30 : vector<1x1x16xf32> to vector<6x6x16xf32>
    %112 = arith.mulf %110, %111 : vector<6x6x16xf32>
    %cst_15 = arith.constant dense<0.000000e+00> : vector<6x6xf32>
    %113 = vector.multi_reduction <add>, %112, %cst_15 [2] : vector<6x6x16xf32> to vector<6x6xf32>
    %114 = vector.shape_cast %113 : vector<6x6xf32> to vector<6x6x1xf32>
    %115 = vector.broadcast %32 : vector<1x1x1xf32> to vector<6x6x1xf32>
    %116 = arith.addf %114, %115 : vector<6x6x1xf32>
    %cst_16 = arith.constant 0.000000e+00 : f32
    %117 = vector.broadcast %cst_16 : f32 to vector<6x6x1xf32>
    %118 = arith.maximumf %116, %117 : vector<6x6x1xf32>
    %119 = vector.extract_strided_slice %2 {offsets = [8, 0], sizes = [1, 16], strides = [1, 1]} : vector<15x16xf32> to vector<1x16xf32>
    %120 = vector.shape_cast %119 : vector<1x16xf32> to vector<1x1x16xf32>
    %121 = vector.broadcast %57 : vector<6x6x1xf32> to vector<6x6x16xf32>
    %122 = vector.broadcast %120 : vector<1x1x16xf32> to vector<6x6x16xf32>
    %123 = arith.mulf %121, %122 : vector<6x6x16xf32>
    %124 = vector.extract_strided_slice %2 {offsets = [9, 0], sizes = [1, 16], strides = [1, 1]} : vector<15x16xf32> to vector<1x16xf32>
    %125 = vector.shape_cast %124 : vector<1x16xf32> to vector<1x1x16xf32>
    %126 = vector.broadcast %80 : vector<6x6x1xf32> to vector<6x6x16xf32>
    %127 = vector.broadcast %125 : vector<1x1x16xf32> to vector<6x6x16xf32>
    %128 = arith.mulf %126, %127 : vector<6x6x16xf32>
    %129 = arith.addf %123, %128 : vector<6x6x16xf32>
    %130 = vector.extract_strided_slice %2 {offsets = [10, 0], sizes = [1, 16], strides = [1, 1]} : vector<15x16xf32> to vector<1x16xf32>
    %131 = vector.shape_cast %130 : vector<1x16xf32> to vector<1x1x16xf32>
    %132 = vector.broadcast %99 : vector<1x6x1xf32> to vector<1x6x16xf32>
    %133 = vector.broadcast %131 : vector<1x1x16xf32> to vector<1x6x16xf32>
    %134 = arith.mulf %132, %133 : vector<1x6x16xf32>
    %135 = vector.broadcast %134 : vector<1x6x16xf32> to vector<6x6x16xf32>
    %136 = arith.addf %129, %135 : vector<6x6x16xf32>
    %137 = vector.extract_strided_slice %2 {offsets = [11, 0], sizes = [1, 16], strides = [1, 1]} : vector<15x16xf32> to vector<1x16xf32>
    %138 = vector.shape_cast %137 : vector<1x16xf32> to vector<1x1x16xf32>
    %139 = vector.broadcast %118 : vector<6x6x1xf32> to vector<6x6x16xf32>
    %140 = vector.broadcast %138 : vector<1x1x16xf32> to vector<6x6x16xf32>
    %141 = arith.mulf %139, %140 : vector<6x6x16xf32>
    %142 = arith.addf %136, %141 : vector<6x6x16xf32>
    %143 = vector.extract_strided_slice %2 {offsets = [12, 0], sizes = [1, 16], strides = [1, 1]} : vector<15x16xf32> to vector<1x16xf32>
    %144 = vector.shape_cast %143 : vector<1x16xf32> to vector<1x1x16xf32>
    %145 = vector.broadcast %144 : vector<1x1x16xf32> to vector<6x6x16xf32>
    %146 = arith.addf %142, %145 : vector<6x6x16xf32>
    %cst_17 = arith.constant 0.000000e+00 : f32
    %147 = vector.broadcast %cst_17 : f32 to vector<6x6x16xf32>
    %148 = arith.maximumf %146, %147 : vector<6x6x16xf32>
    %149 = vector.extract_strided_slice %2 {offsets = [13, 0], sizes = [1, 16], strides = [1, 1]} : vector<15x16xf32> to vector<1x16xf32>
    %150 = vector.shape_cast %149 : vector<1x16xf32> to vector<1x1x16xf32>
    %151 = vector.broadcast %150 : vector<1x1x16xf32> to vector<6x6x16xf32>
    %152 = arith.mulf %148, %151 : vector<6x6x16xf32>
    %cst_18 = arith.constant dense<0.000000e+00> : vector<6x6xf32>
    %153 = vector.multi_reduction <add>, %152, %cst_18 [2] : vector<6x6x16xf32> to vector<6x6xf32>
    %154 = vector.shape_cast %153 : vector<6x6xf32> to vector<6x6x1xf32>
    %155 = vector.broadcast %34 : vector<1x1x1xf32> to vector<6x6x1xf32>
    %156 = arith.addf %154, %155 : vector<6x6x1xf32>
    %cst_19 = arith.constant 0.000000e+00 : f32
    %157 = vector.broadcast %cst_19 : f32 to vector<6x6x1xf32>
    %158 = arith.maximumf %156, %157 : vector<6x6x1xf32>
    %cst_20 = arith.constant dense<0xFF800000> : vector<6x1xf32>
    %159 = vector.multi_reduction <maximumf>, %158, %cst_20 [1] : vector<6x6x1xf32> to vector<6x1xf32>
    %160 = vector.shape_cast %159 : vector<6x1xf32> to vector<6x1x1xf32>
    %161 = vector.broadcast %160 : vector<6x1x1xf32> to vector<6x6x1xf32>
    %162 = arith.subf %158, %161 : vector<6x6x1xf32>
    %163 = math.exp %162 : vector<6x6x1xf32>
    %cst_21 = arith.constant dense<0.000000e+00> : vector<6x1xf32>
    %164 = vector.multi_reduction <add>, %163, %cst_21 [1] : vector<6x6x1xf32> to vector<6x1xf32>
    %165 = vector.shape_cast %164 : vector<6x1xf32> to vector<6x1x1xf32>
    %166 = tpu.reciprocal %165 : vector<6x1x1xf32> -> vector<6x1x1xf32>
    %167 = vector.broadcast %166 : vector<6x1x1xf32> to vector<6x6x1xf32>
    %168 = arith.mulf %163, %167 : vector<6x6x1xf32>
    %169 = vector.shape_cast %1 : vector<6x32xf32> to vector<1x6x32xf32>
    %170 = vector.broadcast %168 : vector<6x6x1xf32> to vector<6x6x32xf32>
    %171 = vector.broadcast %169 : vector<1x6x32xf32> to vector<6x6x32xf32>
    %172 = arith.mulf %170, %171 : vector<6x6x32xf32>
    %cst_22 = arith.constant dense<0.000000e+00> : vector<6x32xf32>
    %173 = vector.multi_reduction <add>, %172, %cst_22 [1] : vector<6x6x32xf32> to vector<6x32xf32>
    %174 = vector.shape_cast %173 : vector<6x32xf32> to vector<6x1x32xf32>
    %c0_23 = arith.constant 0 : index
    %c0_24 = arith.constant 0 : index
    %c0_25 = arith.constant 0 : index
    %175 = vector.load %arg3[%c0_23, %c0_24, %c0_25] : memref<6x1x32xf32, #tpu.memory_space<vmem>>, vector<6x1x32xf32>
    tpu.vector_store %arg3[%c0_23, %c0_24, %c0_25], %174 {strides = array<i32>} : memref<6x1x32xf32, #tpu.memory_space<vmem>>, vector<6x1x32xf32>,
    return
  }
}

</mosaic_0001>

<llo_original>
// kernel: stp_attention_pooling_forward.1
$region0: #{stp_attention_pooling_forward.1}
  #allocation0 [shape = 'u32[]', space=smem, size = 0x4, offset = 0x4, fixed_abs, tag = 'smem constant byte address 0x4 - core index']
  #allocation1 [shape = 'u32[144,128]{1,0:T(1,128)}', space=vmem, size = 0x12000, scoped, tag = 'internal scratch']
  %s0 = inlined_call_operand.vmem [shape: f32[7,6,4], index: 0, kind: input, shape index: {}]
  %s1 = inlined_call_operand.vmem [shape: f32[6,32], index: 1, kind: input, shape index: {}]
  %s2 = inlined_call_operand.vmem [shape: f32[15,16], index: 2, kind: input, shape index: {}]
  %s3 = inlined_call_operand.vmem [shape: f32[6,1,32], index: 3, kind: output, shape index: {}]
  %s4 = sld [smem:[#allocation0]]
  $region22: #{stp_attention_pooling_forward.1} parent=0
    _
  %s6 = ssub.s32 1, %s4
  %s7 = scalar_select 0, %s6, %s4
  // Predicated region
  $region2: #{stp_attention_pooling_forward.1} parent=0 // pred_check
    _
  $region3: #{stp_attention_pooling_forward.1} parent=0 // pred_check_branch
    %9 = sbr.rel (0) target = $region5
  $region4: #{stp_attention_pooling_forward.1} parent=0 // pred_region
    _
  $region5: #{stp_attention_pooling_forward.1} parent=0 // pred_fallthru
    _
  // Predicated region
  $region6: #{stp_attention_pooling_forward.1} parent=0 // pred_check
    _
  $region7: #{stp_attention_pooling_forward.1} parent=0 // pred_check_branch
    %11 = sbr.rel (0) target = $region9
  $region8: #{stp_attention_pooling_forward.1} parent=0 // pred_region
    _
  $region9: #{stp_attention_pooling_forward.1} parent=0 // pred_fallthru
    _
  // Predicated region
  $region10: #{stp_attention_pooling_forward.1} parent=0 // pred_check
    _
  $region11: #{stp_attention_pooling_forward.1} parent=0 // pred_check_branch
    %13 = sbr.rel (0) target = $region13
  $region12: #{stp_attention_pooling_forward.1} parent=0 // pred_region
    _
  $region13: #{stp_attention_pooling_forward.1} parent=0 // pred_fallthru
    _
  %v14 = vld [vmem:[%s0] sm:$0x3f]
  %v15 = vld [vmem:[%s0 + $0x8] sm:$0x3f]
  %v16 = vld [vmem:[%s0 + $0x10] sm:$0x3f]
  %v17 = vld [vmem:[%s0 + $0x18] sm:$0x3f]
  %v18 = vld [vmem:[%s0 + $0x20] sm:$0x3f]
  %v19 = vld [vmem:[%s0 + $0x28] sm:$0x3f]
  %v20 = vld [vmem:[%s0 + $0x30] sm:$0x3f]
  %v21 = vld [vmem:[%s1] sm:$0x3f]
  %v22 = vld [vmem:[%s2] sm:$0xff]
  %v23 = vld [vmem:[%s2 + $0x8] sm:$0x7f]
  %v24 = vsub.f32 %v14, %v15
  %v25 = vsub.f32 %v14, %v16
  %v26 = vsub.f32 %v14, %v17
  %v27 = vsub.f32 %v14, %v18
  %v28 = vsub.f32 %v14, %v19
  %v29 = vsub.f32 %v14, %v20
  %31 = vset.pattern.permute.xlu0 0
  %32 = vperm.xlu0 %31, %v24
  %v33 = vpop.permute.xlu0 %32
  %36 = vset.pattern.permute.xlu0 0
  %37 = vperm.xlu0 %36, %v25
  %v38 = vpop.permute.xlu0 %37
  %41 = vset.pattern.permute.xlu0 0
  %42 = vperm.xlu0 %41, %v26
  %v43 = vpop.permute.xlu0 %42
  %46 = vset.pattern.permute.xlu0 0
  %47 = vperm.xlu0 %46, %v27
  %v48 = vpop.permute.xlu0 %47
  %51 = vset.pattern.permute.xlu0 0
  %52 = vperm.xlu0 %51, %v28
  %v53 = vpop.permute.xlu0 %52
  %56 = vset.pattern.permute.xlu0 0
  %57 = vperm.xlu0 %56, %v29
  %v58 = vpop.permute.xlu0 %57
  %v60 = vlaneseq
  %v61 = vshrl.u32 %v60, 7
  %v62 = vsub.s32 0, %v61
  %v63 = vrot.slane %v22, %v62
  %v64 = vmul.f32 %v33, %v63
  %v65 = vmul.f32 %v38, %v63
  %v66 = vmul.f32 %v43, %v63
  %v67 = vmul.f32 %v48, %v63
  %v68 = vmul.f32 %v53, %v63
  %v69 = vmul.f32 %v58, %v63
  %70 = vset.pattern.permute.xlu0 1
  %71 = vperm.xlu0 %70, %v24
  %v72 = vpop.permute.xlu0 %71
  %74 = vset.pattern.permute.xlu0 1
  %75 = vperm.xlu0 %74, %v25
  %v76 = vpop.permute.xlu0 %75
  %78 = vset.pattern.permute.xlu0 1
  %79 = vperm.xlu0 %78, %v26
  %v80 = vpop.permute.xlu0 %79
  %82 = vset.pattern.permute.xlu0 1
  %83 = vperm.xlu0 %82, %v27
  %v84 = vpop.permute.xlu0 %83
  %86 = vset.pattern.permute.xlu0 1
  %87 = vperm.xlu0 %86, %v28
  %v88 = vpop.permute.xlu0 %87
  %90 = vset.pattern.permute.xlu0 1
  %91 = vperm.xlu0 %90, %v29
  %v92 = vpop.permute.xlu0 %91
  %v94 = vlaneseq
  %v95 = vshrl.u32 %v94, 7
  %v96 = vsub.s32 1, %v95
  %v97 = vrot.slane %v22, %v96
  %v98 = vmul.f32 %v72, %v97
  %v99 = vmul.f32 %v76, %v97
  %v100 = vmul.f32 %v80, %v97
  %v101 = vmul.f32 %v84, %v97
  %v102 = vmul.f32 %v88, %v97
  %v103 = vmul.f32 %v92, %v97
  %v104 = vadd.f32 %v64, %v98
  %v105 = vadd.f32 %v65, %v99
  %v106 = vadd.f32 %v66, %v100
  %v107 = vadd.f32 %v67, %v101
  %v108 = vadd.f32 %v68, %v102
  %v109 = vadd.f32 %v69, %v103
  %v110 = vlaneseq
  %v111 = vshrl.u32 %v110, 7
  %v112 = vsub.s32 2, %v111
  %v113 = vrot.slane %v22, %v112
  %v114 = vadd.f32 %v104, %v113
  %v115 = vadd.f32 %v105, %v113
  %v116 = vadd.f32 %v106, %v113
  %v117 = vadd.f32 %v107, %v113
  %v118 = vadd.f32 %v108, %v113
  %v119 = vadd.f32 %v109, %v113
  %v120 = vmax.f32 %v114, 0.0
  %v121 = vmax.f32 %v115, 0.0
  %v122 = vmax.f32 %v116, 0.0
  %v123 = vmax.f32 %v117, 0.0
  %v124 = vmax.f32 %v118, 0.0
  %v125 = vmax.f32 %v119, 0.0
  %v126 = vlaneseq
  %v127 = vshrl.u32 %v126, 7
  %v128 = vsub.s32 3, %v127
  %v129 = vrot.slane %v22, %v128
  %v130 = vmul.f32 %v120, %v129
  %v131 = vmul.f32 %v121, %v129
  %v132 = vmul.f32 %v122, %v129
  %v133 = vmul.f32 %v123, %v129
  %v134 = vmul.f32 %v124, %v129
  %v135 = vmul.f32 %v125, %v129
  %vm136 = vcmask 128000
  %v137 = vsel %vm136, %v130, 0.0
  %138 = vadd.xlane.f32.xlu0 %v137
  %v139 = vpop.xlane.xlu0 %138
  %v140 = vsel %vm136, %v131, 0.0
  %141 = vadd.xlane.f32.xlu0 %v140
  %v142 = vpop.xlane.xlu0 %141
  %v143 = vsel %vm136, %v132, 0.0
  %144 = vadd.xlane.f32.xlu0 %v143
  %v145 = vpop.xlane.xlu0 %144
  %v146 = vsel %vm136, %v133, 0.0
  %147 = vadd.xlane.f32.xlu0 %v146
  %v148 = vpop.xlane.xlu0 %147
  %v149 = vsel %vm136, %v134, 0.0
  %150 = vadd.xlane.f32.xlu0 %v149
  %v151 = vpop.xlane.xlu0 %150
  %v152 = vsel %vm136, %v135, 0.0
  %153 = vadd.xlane.f32.xlu0 %v152
  %v154 = vpop.xlane.xlu0 %153
  %v155 = vlaneseq
  %v156 = vshrl.u32 %v155, 7
  %v157 = vsub.s32 6, %v156
  %v158 = vrot.slane %v23, %v157
  %v159 = vadd.f32 %v139, %v158
  %v160 = vadd.f32 %v142, %v158
  %v161 = vadd.f32 %v145, %v158
  %v162 = vadd.f32 %v148, %v158
  %v163 = vadd.f32 %v151, %v158
  %v164 = vadd.f32 %v154, %v158
  %v165 = vmax.f32 %v159, 0.0
  %v166 = vmax.f32 %v160, 0.0
  %v167 = vmax.f32 %v161, 0.0
  %v168 = vmax.f32 %v162, 0.0
  %v169 = vmax.f32 %v163, 0.0
  %v170 = vmax.f32 %v164, 0.0
  %171 = vset.pattern.permute.xlu0 2
  %172 = vperm.xlu0 %171, %v24
  %v173 = vpop.permute.xlu0 %172
  %175 = vset.pattern.permute.xlu0 2
  %176 = vperm.xlu0 %175, %v25
  %v177 = vpop.permute.xlu0 %176
  %179 = vset.pattern.permute.xlu0 2
  %180 = vperm.xlu0 %179, %v26
  %v181 = vpop.permute.xlu0 %180
  %183 = vset.pattern.permute.xlu0 2
  %184 = vperm.xlu0 %183, %v27
  %v185 = vpop.permute.xlu0 %184
  %187 = vset.pattern.permute.xlu0 2
  %188 = vperm.xlu0 %187, %v28
  %v189 = vpop.permute.xlu0 %188
  %191 = vset.pattern.permute.xlu0 2
  %192 = vperm.xlu0 %191, %v29
  %v193 = vpop.permute.xlu0 %192
  %v195 = vmul.f32 %v173, %v63
  %v196 = vmul.f32 %v177, %v63
  %v197 = vmul.f32 %v181, %v63
  %v198 = vmul.f32 %v185, %v63
  %v199 = vmul.f32 %v189, %v63
  %v200 = vmul.f32 %v193, %v63
  %201 = vset.pattern.permute.xlu0 3
  %202 = vperm.xlu0 %201, %v24
  %v203 = vpop.permute.xlu0 %202
  %205 = vset.pattern.permute.xlu0 3
  %206 = vperm.xlu0 %205, %v25
  %v207 = vpop.permute.xlu0 %206
  %209 = vset.pattern.permute.xlu0 3
  %210 = vperm.xlu0 %209, %v26
  %v211 = vpop.permute.xlu0 %210
  %213 = vset.pattern.permute.xlu0 3
  %214 = vperm.xlu0 %213, %v27
  %v215 = vpop.permute.xlu0 %214
  %217 = vset.pattern.permute.xlu0 3
  %218 = vperm.xlu0 %217, %v28
  %v219 = vpop.permute.xlu0 %218
  %221 = vset.pattern.permute.xlu0 3
  %222 = vperm.xlu0 %221, %v29
  %v223 = vpop.permute.xlu0 %222
  %v225 = vmul.f32 %v203, %v97
  %v226 = vmul.f32 %v207, %v97
  %v227 = vmul.f32 %v211, %v97
  %v228 = vmul.f32 %v215, %v97
  %v229 = vmul.f32 %v219, %v97
  %v230 = vmul.f32 %v223, %v97
  %v231 = vadd.f32 %v195, %v225
  %v232 = vadd.f32 %v196, %v226
  %v233 = vadd.f32 %v197, %v227
  %v234 = vadd.f32 %v198, %v228
  %v235 = vadd.f32 %v199, %v229
  %v236 = vadd.f32 %v200, %v230
  %v237 = vadd.f32 %v231, %v113
  %v238 = vadd.f32 %v232, %v113
  %v239 = vadd.f32 %v233, %v113
  %v240 = vadd.f32 %v234, %v113
  %v241 = vadd.f32 %v235, %v113
  %v242 = vadd.f32 %v236, %v113
  %v243 = vmax.f32 %v237, 0.0
  %v244 = vmax.f32 %v238, 0.0
  %v245 = vmax.f32 %v239, 0.0
  %v246 = vmax.f32 %v240, 0.0
  %v247 = vmax.f32 %v241, 0.0
  %v248 = vmax.f32 %v242, 0.0
  %v249 = vmul.f32 %v243, %v129
  %v250 = vmul.f32 %v244, %v129
  %v251 = vmul.f32 %v245, %v129
  %v252 = vmul.f32 %v246, %v129
  %v253 = vmul.f32 %v247, %v129
  %v254 = vmul.f32 %v248, %v129
  %v255 = vsel %vm136, %v249, 0.0
  %256 = vadd.xlane.f32.xlu0 %v255
  %v257 = vpop.xlane.xlu0 %256
  %v258 = vsel %vm136, %v250, 0.0
  %259 = vadd.xlane.f32.xlu0 %v258
  %v260 = vpop.xlane.xlu0 %259
  %v261 = vsel %vm136, %v251, 0.0
  %262 = vadd.xlane.f32.xlu0 %v261
  %v263 = vpop.xlane.xlu0 %262
  %v264 = vsel %vm136, %v252, 0.0
  %265 = vadd.xlane.f32.xlu0 %v264
  %v266 = vpop.xlane.xlu0 %265
  %v267 = vsel %vm136, %v253, 0.0
  %268 = vadd.xlane.f32.xlu0 %v267
  %v269 = vpop.xlane.xlu0 %268
  %v270 = vsel %vm136, %v254, 0.0
  %271 = vadd.xlane.f32.xlu0 %v270
  %v272 = vpop.xlane.xlu0 %271
  %v273 = vadd.f32 %v257, %v158
  %v274 = vadd.f32 %v260, %v158
  %v275 = vadd.f32 %v263, %v158
  %v276 = vadd.f32 %v266, %v158
  %v277 = vadd.f32 %v269, %v158
  %v278 = vadd.f32 %v272, %v158
  %v279 = vmax.f32 %v273, 0.0
  %v280 = vmax.f32 %v274, 0.0
  %v281 = vmax.f32 %v275, 0.0
  %v282 = vmax.f32 %v276, 0.0
  %v283 = vmax.f32 %v277, 0.0
  %v284 = vmax.f32 %v278, 0.0
  %286 = vset.pattern.permute.xlu0 0
  %287 = vperm.xlu0 %286, %v14
  %v288 = vpop.permute.xlu0 %287
  %v290 = vlaneseq
  %v291 = vshrl.u32 %v290, 7
  %v292 = vsub.s32 4, %v291
  %v293 = vrot.slane %v22, %v292
  %v294 = vmul.f32 %v288, %v293
  %295 = vset.pattern.permute.xlu0 1
  %296 = vperm.xlu0 %295, %v14
  %v297 = vpop.permute.xlu0 %296
  %v299 = vlaneseq
  %v300 = vshrl.u32 %v299, 7
  %v301 = vsub.s32 5, %v300
  %v302 = vrot.slane %v22, %v301
  %v303 = vmul.f32 %v297, %v302
  %v304 = vadd.f32 %v294, %v303
  %v305 = vlaneseq
  %v306 = vshrl.u32 %v305, 7
  %v307 = vsub.s32 6, %v306
  %v308 = vrot.slane %v22, %v307
  %v309 = vadd.f32 %v304, %v308
  %v310 = vmax.f32 %v309, 0.0
  %v311 = vlaneseq
  %v312 = vshrl.u32 %v311, 7
  %v313 = vsub.s32 7, %v312
  %v314 = vrot.slane %v22, %v313
  %v315 = vmul.f32 %v310, %v314
  %v316 = vsel %vm136, %v315, 0.0
  %317 = vadd.xlane.f32.xlu0 %v316
  %v318 = vpop.xlane.xlu0 %317
  %v319 = vadd.f32 %v318, %v158
  %v320 = vmax.f32 %v319, 0.0
  %322 = vset.pattern.permute.xlu0 0
  %323 = vperm.xlu0 %322, %v15
  %v324 = vpop.permute.xlu0 %323
  %327 = vset.pattern.permute.xlu0 0
  %328 = vperm.xlu0 %327, %v16
  %v329 = vpop.permute.xlu0 %328
  %332 = vset.pattern.permute.xlu0 0
  %333 = vperm.xlu0 %332, %v17
  %v334 = vpop.permute.xlu0 %333
  %337 = vset.pattern.permute.xlu0 0
  %338 = vperm.xlu0 %337, %v18
  %v339 = vpop.permute.xlu0 %338
  %342 = vset.pattern.permute.xlu0 0
  %343 = vperm.xlu0 %342, %v19
  %v344 = vpop.permute.xlu0 %343
  %347 = vset.pattern.permute.xlu0 0
  %348 = vperm.xlu0 %347, %v20
  %v349 = vpop.permute.xlu0 %348
  %v351 = vmul.f32 %v324, %v293
  %v352 = vmul.f32 %v329, %v293
  %v353 = vmul.f32 %v334, %v293
  %v354 = vmul.f32 %v339, %v293
  %v355 = vmul.f32 %v344, %v293
  %v356 = vmul.f32 %v349, %v293
  %357 = vset.pattern.permute.xlu0 1
  %358 = vperm.xlu0 %357, %v15
  %v359 = vpop.permute.xlu0 %358
  %361 = vset.pattern.permute.xlu0 1
  %362 = vperm.xlu0 %361, %v16
  %v363 = vpop.permute.xlu0 %362
  %365 = vset.pattern.permute.xlu0 1
  %366 = vperm.xlu0 %365, %v17
  %v367 = vpop.permute.xlu0 %366
  %369 = vset.pattern.permute.xlu0 1
  %370 = vperm.xlu0 %369, %v18
  %v371 = vpop.permute.xlu0 %370
  %373 = vset.pattern.permute.xlu0 1
  %374 = vperm.xlu0 %373, %v19
  %v375 = vpop.permute.xlu0 %374
  %377 = vset.pattern.permute.xlu0 1
  %378 = vperm.xlu0 %377, %v20
  %v379 = vpop.permute.xlu0 %378
  %v381 = vmul.f32 %v359, %v302
  %v382 = vmul.f32 %v363, %v302
  %v383 = vmul.f32 %v367, %v302
  %v384 = vmul.f32 %v371, %v302
  %v385 = vmul.f32 %v375, %v302
  %v386 = vmul.f32 %v379, %v302
  %v387 = vadd.f32 %v351, %v381
  %v388 = vadd.f32 %v352, %v382
  %v389 = vadd.f32 %v353, %v383
  %v390 = vadd.f32 %v354, %v384
  %v391 = vadd.f32 %v355, %v385
  %v392 = vadd.f32 %v356, %v386
  %v393 = vadd.f32 %v387, %v308
  %v394 = vadd.f32 %v388, %v308
  %v395 = vadd.f32 %v389, %v308
  %v396 = vadd.f32 %v390, %v308
  %v397 = vadd.f32 %v391, %v308
  %v398 = vadd.f32 %v392, %v308
  %v399 = vmax.f32 %v393, 0.0
  %v400 = vmax.f32 %v394, 0.0
  %v401 = vmax.f32 %v395, 0.0
  %v402 = vmax.f32 %v396, 0.0
  %v403 = vmax.f32 %v397, 0.0
  %v404 = vmax.f32 %v398, 0.0
  %v405 = vmul.f32 %v399, %v314
  %v406 = vmul.f32 %v400, %v314
  %v407 = vmul.f32 %v401, %v314
  %v408 = vmul.f32 %v402, %v314
  %v409 = vmul.f32 %v403, %v314
  %v410 = vmul.f32 %v404, %v314
  %v411 = vsel %vm136, %v405, 0.0
  %412 = vadd.xlane.f32.xlu0 %v411
  %v413 = vpop.xlane.xlu0 %412
  %v414 = vsel %vm136, %v406, 0.0
  %415 = vadd.xlane.f32.xlu0 %v414
  %v416 = vpop.xlane.xlu0 %415
  %v417 = vsel %vm136, %v407, 0.0
  %418 = vadd.xlane.f32.xlu0 %v417
  %v419 = vpop.xlane.xlu0 %418
  %v420 = vsel %vm136, %v408, 0.0
  %421 = vadd.xlane.f32.xlu0 %v420
  %v422 = vpop.xlane.xlu0 %421
  %v423 = vsel %vm136, %v409, 0.0
  %424 = vadd.xlane.f32.xlu0 %v423
  %v425 = vpop.xlane.xlu0 %424
  %v426 = vsel %vm136, %v410, 0.0
  %427 = vadd.xlane.f32.xlu0 %v426
  %v428 = vpop.xlane.xlu0 %427
  %v429 = vadd.f32 %v413, %v158
  %v430 = vadd.f32 %v416, %v158
  %v431 = vadd.f32 %v419, %v158
  %v432 = vadd.f32 %v422, %v158
  %v433 = vadd.f32 %v425, %v158
  %v434 = vadd.f32 %v428, %v158
  %v435 = vmax.f32 %v429, 0.0
  %v436 = vmax.f32 %v430, 0.0
  %v437 = vmax.f32 %v431, 0.0
  %v438 = vmax.f32 %v432, 0.0
  %v439 = vmax.f32 %v433, 0.0
  %v440 = vmax.f32 %v434, 0.0
  %442 = vset.pattern.permute.xlu0 0
  %443 = vperm.xlu0 %442, %v165
  %v444 = vpop.permute.xlu0 %443
  %447 = vset.pattern.permute.xlu0 0
  %448 = vperm.xlu0 %447, %v166
  %v449 = vpop.permute.xlu0 %448
  %452 = vset.pattern.permute.xlu0 0
  %453 = vperm.xlu0 %452, %v167
  %v454 = vpop.permute.xlu0 %453
  %457 = vset.pattern.permute.xlu0 0
  %458 = vperm.xlu0 %457, %v168
  %v459 = vpop.permute.xlu0 %458
  %462 = vset.pattern.permute.xlu0 0
  %463 = vperm.xlu0 %462, %v169
  %v464 = vpop.permute.xlu0 %463
  %467 = vset.pattern.permute.xlu0 0
  %468 = vperm.xlu0 %467, %v170
  %v469 = vpop.permute.xlu0 %468
  %v471 = vlaneseq
  %v472 = vshrl.u32 %v471, 7
  %v473 = vsub.s32 0, %v472
  %v474 = vrot.slane %v23, %v473
  %v475 = vmul.f32 %v444, %v474
  %v476 = vmul.f32 %v449, %v474
  %v477 = vmul.f32 %v454, %v474
  %v478 = vmul.f32 %v459, %v474
  %v479 = vmul.f32 %v464, %v474
  %v480 = vmul.f32 %v469, %v474
  %482 = vset.pattern.permute.xlu0 0
  %483 = vperm.xlu0 %482, %v279
  %v484 = vpop.permute.xlu0 %483
  %487 = vset.pattern.permute.xlu0 0
  %488 = vperm.xlu0 %487, %v280
  %v489 = vpop.permute.xlu0 %488
  %492 = vset.pattern.permute.xlu0 0
  %493 = vperm.xlu0 %492, %v281
  %v494 = vpop.permute.xlu0 %493
  %497 = vset.pattern.permute.xlu0 0
  %498 = vperm.xlu0 %497, %v282
  %v499 = vpop.permute.xlu0 %498
  %502 = vset.pattern.permute.xlu0 0
  %503 = vperm.xlu0 %502, %v283
  %v504 = vpop.permute.xlu0 %503
  %507 = vset.pattern.permute.xlu0 0
  %508 = vperm.xlu0 %507, %v284
  %v509 = vpop.permute.xlu0 %508
  %v511 = vlaneseq
  %v512 = vshrl.u32 %v511, 7
  %v513 = vsub.s32 1, %v512
  %v514 = vrot.slane %v23, %v513
  %v515 = vmul.f32 %v484, %v514
  %v516 = vmul.f32 %v489, %v514
  %v517 = vmul.f32 %v494, %v514
  %v518 = vmul.f32 %v499, %v514
  %v519 = vmul.f32 %v504, %v514
  %v520 = vmul.f32 %v509, %v514
  %v521 = vadd.f32 %v475, %v515
  %v522 = vadd.f32 %v476, %v516
  %v523 = vadd.f32 %v477, %v517
  %v524 = vadd.f32 %v478, %v518
  %v525 = vadd.f32 %v479, %v519
  %v526 = vadd.f32 %v480, %v520
  %528 = vset.pattern.permute.xlu0 1
  %529 = vperm.xlu0 %528, %v320
  %v530 = vpop.permute.xlu0 %529
  %v532 = vlaneseq
  %v533 = vshrl.u32 %v532, 7
  %v534 = vsub.s32 2, %v533
  %v535 = vrot.slane %v23, %v534
  %v536 = vmul.f32 %v530, %v535
  %v537 = vadd.f32 %v521, %v536
  %v538 = vadd.f32 %v522, %v536
  %v539 = vadd.f32 %v523, %v536
  %v540 = vadd.f32 %v524, %v536
  %v541 = vadd.f32 %v525, %v536
  %v542 = vadd.f32 %v526, %v536
  %544 = vset.pattern.permute.xlu0 1
  %545 = vperm.xlu0 %544, %v435
  %v546 = vpop.permute.xlu0 %545
  %549 = vset.pattern.permute.xlu0 1
  %550 = vperm.xlu0 %549, %v436
  %v551 = vpop.permute.xlu0 %550
  %554 = vset.pattern.permute.xlu0 1
  %555 = vperm.xlu0 %554, %v437
  %v556 = vpop.permute.xlu0 %555
  %559 = vset.pattern.permute.xlu0 1
  %560 = vperm.xlu0 %559, %v438
  %v561 = vpop.permute.xlu0 %560
  %564 = vset.pattern.permute.xlu0 1
  %565 = vperm.xlu0 %564, %v439
  %v566 = vpop.permute.xlu0 %565
  %569 = vset.pattern.permute.xlu0 1
  %570 = vperm.xlu0 %569, %v440
  %v571 = vpop.permute.xlu0 %570
  %v573 = vlaneseq
  %v574 = vshrl.u32 %v573, 7
  %v575 = vsub.s32 3, %v574
  %v576 = vrot.slane %v23, %v575
  %v577 = vmul.f32 %v546, %v576
  %v578 = vmul.f32 %v551, %v576
  %v579 = vmul.f32 %v556, %v576
  %v580 = vmul.f32 %v561, %v576
  %v581 = vmul.f32 %v566, %v576
  %v582 = vmul.f32 %v571, %v576
  %v583 = vadd.f32 %v537, %v577
  %v584 = vadd.f32 %v538, %v578
  %v585 = vadd.f32 %v539, %v579
  %v586 = vadd.f32 %v540, %v580
  %v587 = vadd.f32 %v541, %v581
  %v588 = vadd.f32 %v542, %v582
  %v589 = vlaneseq
  %v590 = vshrl.u32 %v589, 7
  %v591 = vsub.s32 4, %v590
  %v592 = vrot.slane %v23, %v591
  %v593 = vadd.f32 %v583, %v592
  %v594 = vadd.f32 %v584, %v592
  %v595 = vadd.f32 %v585, %v592
  %v596 = vadd.f32 %v586, %v592
  %v597 = vadd.f32 %v587, %v592
  %v598 = vadd.f32 %v588, %v592
  %v599 = vmax.f32 %v593, 0.0
  %v600 = vmax.f32 %v594, 0.0
  %v601 = vmax.f32 %v595, 0.0
  %v602 = vmax.f32 %v596, 0.0
  %v603 = vmax.f32 %v597, 0.0
  %v604 = vmax.f32 %v598, 0.0
  %v605 = vlaneseq
  %v606 = vshrl.u32 %v605, 7
  %v607 = vsub.s32 5, %v606
  %v608 = vrot.slane %v23, %v607
  %v609 = vmul.f32 %v599, %v608
  %v610 = vmul.f32 %v600, %v608
  %v611 = vmul.f32 %v601, %v608
  %v612 = vmul.f32 %v602, %v608
  %v613 = vmul.f32 %v603, %v608
  %v614 = vmul.f32 %v604, %v608
  %v615 = vsel %vm136, %v609, 0.0
  %616 = vadd.xlane.f32.xlu0 %v615
  %v617 = vpop.xlane.xlu0 %616
  %v618 = vsel %vm136, %v610, 0.0
  %619 = vadd.xlane.f32.xlu0 %v618
  %v620 = vpop.xlane.xlu0 %619
  %v621 = vsel %vm136, %v611, 0.0
  %622 = vadd.xlane.f32.xlu0 %v621
  %v623 = vpop.xlane.xlu0 %622
  %v624 = vsel %vm136, %v612, 0.0
  %625 = vadd.xlane.f32.xlu0 %v624
  %v626 = vpop.xlane.xlu0 %625
  %v627 = vsel %vm136, %v613, 0.0
  %628 = vadd.xlane.f32.xlu0 %v627
  %v629 = vpop.xlane.xlu0 %628
  %v630 = vsel %vm136, %v614, 0.0
  %631 = vadd.xlane.f32.xlu0 %v630
  %v632 = vpop.xlane.xlu0 %631
  %v633 = vadd.f32 %v617, %v158
  %v634 = vadd.f32 %v620, %v158
  %v635 = vadd.f32 %v623, %v158
  %v636 = vadd.f32 %v626, %v158
  %v637 = vadd.f32 %v629, %v158
  %v638 = vadd.f32 %v632, %v158
  %v639 = vmax.f32 %v633, 0.0
  %v640 = vmax.f32 %v634, 0.0
  %v641 = vmax.f32 %v635, 0.0
  %v642 = vmax.f32 %v636, 0.0
  %v643 = vmax.f32 %v637, 0.0
  %v644 = vmax.f32 %v638, 0.0
  %vm645 = vcmask 21520
  %v646 = vsel %vm645, %v639, -inf
  %v647 = vrot.slane %v646, 4
  %v648 = vmax.f32 %v646, %v647
  %v649 = vrot.slane %v648, 2
  %v650 = vmax.f32 %v648, %v649
  %v651 = vrot.slane %v650, 1
  %v652 = vmax.f32 %v650, %v651
  %v653 = vsel %vm645, %v640, -inf
  %v654 = vrot.slane %v653, 4
  %v655 = vmax.f32 %v653, %v654
  %v656 = vrot.slane %v655, 2
  %v657 = vmax.f32 %v655, %v656
  %v658 = vrot.slane %v657, 1
  %v659 = vmax.f32 %v657, %v658
  %v660 = vsel %vm645, %v641, -inf
  %v661 = vrot.slane %v660, 4
  %v662 = vmax.f32 %v660, %v661
  %v663 = vrot.slane %v662, 2
  %v664 = vmax.f32 %v662, %v663
  %v665 = vrot.slane %v664, 1
  %v666 = vmax.f32 %v664, %v665
  %v667 = vsel %vm645, %v642, -inf
  %v668 = vrot.slane %v667, 4
  %v669 = vmax.f32 %v667, %v668
  %v670 = vrot.slane %v669, 2
  %v671 = vmax.f32 %v669, %v670
  %v672 = vrot.slane %v671, 1
  %v673 = vmax.f32 %v671, %v672
  %v674 = vsel %vm645, %v643, -inf
  %v675 = vrot.slane %v674, 4
  %v676 = vmax.f32 %v674, %v675
  %v677 = vrot.slane %v676, 2
  %v678 = vmax.f32 %v676, %v677
  %v679 = vrot.slane %v678, 1
  %v680 = vmax.f32 %v678, %v679
  %v681 = vsel %vm645, %v644, -inf
  %v682 = vrot.slane %v681, 4
  %v683 = vmax.f32 %v681, %v682
  %v684 = vrot.slane %v683, 2
  %v685 = vmax.f32 %v683, %v684
  %v686 = vrot.slane %v685, 1
  %v687 = vmax.f32 %v685, %v686
  %v688 = vsub.f32 %v639, %v652
  %v689 = vsub.f32 %v640, %v659
  %v690 = vsub.f32 %v641, %v666
  %v691 = vsub.f32 %v642, %v673
  %v692 = vsub.f32 %v643, %v680
  %v693 = vsub.f32 %v644, %v687
  %v694 = vmul.f32 %v688, 1.442695
  %v695 = vpow.pop %v694
  %v696 = vmul.f32 %v689, 1.442695
  %v697 = vpow.pop %v696
  %v698 = vmul.f32 %v690, 1.442695
  %v699 = vpow.pop %v698
  %v700 = vmul.f32 %v691, 1.442695
  %v701 = vpow.pop %v700
  %v702 = vmul.f32 %v692, 1.442695
  %v703 = vpow.pop %v702
  %v704 = vmul.f32 %v693, 1.442695
  %v705 = vpow.pop %v704
  %v706 = vsel %vm645, %v695, 0.0
  %v707 = vrot.slane %v706, 4
  %v708 = vadd.f32 %v706, %v707
  %v709 = vrot.slane %v708, 2
  %v710 = vadd.f32 %v708, %v709
  %v711 = vrot.slane %v710, 1
  %v712 = vadd.f32 %v710, %v711
  %v713 = vsel %vm645, %v697, 0.0
  %v714 = vrot.slane %v713, 4
  %v715 = vadd.f32 %v713, %v714
  %v716 = vrot.slane %v715, 2
  %v717 = vadd.f32 %v715, %v716
  %v718 = vrot.slane %v717, 1
  %v719 = vadd.f32 %v717, %v718
  %v720 = vsel %vm645, %v699, 0.0
  %v721 = vrot.slane %v720, 4
  %v722 = vadd.f32 %v720, %v721
  %v723 = vrot.slane %v722, 2
  %v724 = vadd.f32 %v722, %v723
  %v725 = vrot.slane %v724, 1
  %v726 = vadd.f32 %v724, %v725
  %v727 = vsel %vm645, %v701, 0.0
  %v728 = vrot.slane %v727, 4
  %v729 = vadd.f32 %v727, %v728
  %v730 = vrot.slane %v729, 2
  %v731 = vadd.f32 %v729, %v730
  %v732 = vrot.slane %v731, 1
  %v733 = vadd.f32 %v731, %v732
  %v734 = vsel %vm645, %v703, 0.0
  %v735 = vrot.slane %v734, 4
  %v736 = vadd.f32 %v734, %v735
  %v737 = vrot.slane %v736, 2
  %v738 = vadd.f32 %v736, %v737
  %v739 = vrot.slane %v738, 1
  %v740 = vadd.f32 %v738, %v739
  %v741 = vsel %vm645, %v705, 0.0
  %v742 = vrot.slane %v741, 4
  %v743 = vadd.f32 %v741, %v742
  %v744 = vrot.slane %v743, 2
  %v745 = vadd.f32 %v743, %v744
  %v746 = vrot.slane %v745, 1
  %v747 = vadd.f32 %v745, %v746
  %v748 = vrcp.pop %v712
  %v749 = vrcp.pop %v719
  %v750 = vrcp.pop %v726
  %v751 = vrcp.pop %v733
  %v752 = vrcp.pop %v740
  %v753 = vrcp.pop %v747
  %v754 = vmul.f32 %v695, %v748
  %v755 = vmul.f32 %v697, %v749
  %v756 = vmul.f32 %v699, %v750
  %v757 = vmul.f32 %v701, %v751
  %v758 = vmul.f32 %v703, %v752
  %v759 = vmul.f32 %v705, %v753
  %761 = vset.pattern.permute.xlu0 2
  %762 = vperm.xlu0 %761, %v754
  %v763 = vpop.permute.xlu0 %762
  %766 = vset.pattern.permute.xlu0 2
  %767 = vperm.xlu0 %766, %v755
  %v768 = vpop.permute.xlu0 %767
  %771 = vset.pattern.permute.xlu0 2
  %772 = vperm.xlu0 %771, %v756
  %v773 = vpop.permute.xlu0 %772
  %776 = vset.pattern.permute.xlu0 2
  %777 = vperm.xlu0 %776, %v757
  %v778 = vpop.permute.xlu0 %777
  %781 = vset.pattern.permute.xlu0 2
  %782 = vperm.xlu0 %781, %v758
  %v783 = vpop.permute.xlu0 %782
  %786 = vset.pattern.permute.xlu0 2
  %787 = vperm.xlu0 %786, %v759
  %v788 = vpop.permute.xlu0 %787
  %v790 = vmul.f32 %v763, %v21
  %v791 = vmul.f32 %v768, %v21
  %v792 = vmul.f32 %v773, %v21
  %v793 = vmul.f32 %v778, %v21
  %v794 = vmul.f32 %v783, %v21
  %v795 = vmul.f32 %v788, %v21
  %vm796 = vcmask 259072
  %v797 = vsel %vm796, %v790, 0.0
  %v798 = vrot.slane %v797, 4
  %v799 = vadd.f32 %v797, %v798
  %v800 = vrot.slane %v799, 2
  %v801 = vadd.f32 %v799, %v800
  %v802 = vrot.slane %v801, 1
  %v803 = vadd.f32 %v801, %v802
  %v804 = vsel %vm796, %v791, 0.0
  %v805 = vrot.slane %v804, 4
  %v806 = vadd.f32 %v804, %v805
  %v807 = vrot.slane %v806, 2
  %v808 = vadd.f32 %v806, %v807
  %v809 = vrot.slane %v808, 1
  %v810 = vadd.f32 %v808, %v809
  %v811 = vsel %vm796, %v792, 0.0
  %v812 = vrot.slane %v811, 4
  %v813 = vadd.f32 %v811, %v812
  %v814 = vrot.slane %v813, 2
  %v815 = vadd.f32 %v813, %v814
  %v816 = vrot.slane %v815, 1
  %v817 = vadd.f32 %v815, %v816
  %v818 = vsel %vm796, %v793, 0.0
  %v819 = vrot.slane %v818, 4
  %v820 = vadd.f32 %v818, %v819
  %v821 = vrot.slane %v820, 2
  %v822 = vadd.f32 %v820, %v821
  %v823 = vrot.slane %v822, 1
  %v824 = vadd.f32 %v822, %v823
  %v825 = vsel %vm796, %v794, 0.0
  %v826 = vrot.slane %v825, 4
  %v827 = vadd.f32 %v825, %v826
  %v828 = vrot.slane %v827, 2
  %v829 = vadd.f32 %v827, %v828
  %v830 = vrot.slane %v829, 1
  %v831 = vadd.f32 %v829, %v830
  %v832 = vsel %vm796, %v795, 0.0
  %v833 = vrot.slane %v832, 4
  %v834 = vadd.f32 %v832, %v833
  %v835 = vrot.slane %v834, 2
  %v836 = vadd.f32 %v834, %v835
  %v837 = vrot.slane %v836, 1
  %v838 = vadd.f32 %v836, %v837
  %vm839 = vcmask 253952
  %840 = vst.msk [vmem:[%s3] sm:$0x1] %vm839, %v803
  %841 = vst.msk [vmem:[%s3 + $0x1] sm:$0x1] %vm839, %v810
  %842 = vst.msk [vmem:[%s3 + $0x2] sm:$0x1] %vm839, %v817
  %843 = vst.msk [vmem:[%s3 + $0x3] sm:$0x1] %vm839, %v824
  %844 = vst.msk [vmem:[%s3 + $0x4] sm:$0x1] %vm839, %v831
  %845 = vst.msk [vmem:[%s3 + $0x5] sm:$0x1] %vm839, %v838
  // Predicated region
  $region14: #{stp_attention_pooling_forward.1} parent=0 // pred_check
    _
  $region15: #{stp_attention_pooling_forward.1} parent=0 // pred_check_branch
    %847 = sbr.rel (0) target = $region17
  $region16: #{stp_attention_pooling_forward.1} parent=0 // pred_region
    _
  $region17: #{stp_attention_pooling_forward.1} parent=0 // pred_fallthru
    _
  // Predicated region
  $region18: #{stp_attention_pooling_forward.1} parent=0 // pred_check
    _
  $region19: #{stp_attention_pooling_forward.1} parent=0 // pred_check_branch
    %849 = sbr.rel (0) target = $region21
  $region20: #{stp_attention_pooling_forward.1} parent=0 // pred_region
    _
  $region21: #{stp_attention_pooling_forward.1} parent=0 // pred_fallthru
    _

</llo_original>
